<compile_context>
chip_gen: v7x
topology: tpu7x:2x2x1
jax: 0.10.0
libtpu: 0.0.40
codegen_flags: <defaults>
</compile_context>

<pallas_src>
import functools

import jax
import jax.numpy as jnp
from jax.experimental import pallas as pl
from jax.experimental.pallas import tpu as pltpu

_LANES = 128
_TILE_BUDGET_BYTES = 4 << 20          # ~4 MiB per input buffer
_VMEM_LIMIT_BYTES = 32 << 20          # safe scoped limit on v5e/v6e/v7x


def _bce_with_logits(x, g):
    """binary_cross_entropy_with_logits(x, sigmoid(g)), numerically stable."""
    y = jax.nn.sigmoid(g)
    return jnp.maximum(x, 0.0) - x * y + jnp.log1p(jnp.exp(-jnp.abs(x)))


def _fused_small_kernel(pred_ref, tgt_ref, loss_ref, *, inv_hw, inv_b):
    """Single grid step: all batches at once.

    pred_ref: (b, H, W) channel-1 slab of net_output
    tgt_ref:  (b, H, W) channel-0 slab of target
    loss_ref: (1, 128)  lane-broadcast scalar batch-mean loss
    """
    p = pred_ref[...].astype(jnp.float32)
    t = tgt_ref[...].astype(jnp.float32)
    x = jnp.sum(jnp.sum(p, axis=-1), axis=-1, keepdims=True) * inv_hw   # (b, 1)
    g = jnp.sum(jnp.sum(t, axis=-1), axis=-1, keepdims=True) * inv_hw   # (b, 1)
    per = _bce_with_logits(x, g)                                        # (b, 1)
    mean = jnp.sum(per, axis=0, keepdims=True) * inv_b                  # (1, 1)
    loss_ref[...] = jnp.broadcast_to(mean, loss_ref.shape).astype(loss_ref.dtype)


def _tiled_kernel(pred_ref, tgt_ref, loss_ref, pred_acc, tgt_acc, *, inv_hw):
    """Grid = (batch, spatial_tiles); the spatial axis is the reduction axis.

    pred_ref / tgt_ref: (tile_h, W) spatial tile of batch i (channel picked in
                        the BlockSpec index_map)
    loss_ref:           (1, 128) per-batch output block (written once)
    pred_acc / tgt_acc: (1, W) f32 lane-shaped running sums.
    """
    j = pl.program_id(1)
    nj = pl.num_programs(1)

    @pl.when(j == 0)
    def _():
        pred_acc[...] = jnp.zeros_like(pred_acc)
        tgt_acc[...] = jnp.zeros_like(tgt_acc)

    # Per-lane partial sums; the cross-lane reduce is deferred to the epilogue.
    pred_acc[...] += jnp.sum(pred_ref[...].astype(jnp.float32), axis=0,
                             keepdims=True)
    tgt_acc[...] += jnp.sum(tgt_ref[...].astype(jnp.float32), axis=0,
                            keepdims=True)

    @pl.when(j == nj - 1)
    def _():
        x = jnp.sum(pred_acc[...], keepdims=True) * inv_hw    # (1,1) pred mean (logit)
        g = jnp.sum(tgt_acc[...], keepdims=True) * inv_hw     # (1,1) target mean
        loss = _bce_with_logits(x, g)
        loss_ref[...] = jnp.broadcast_to(loss, loss_ref.shape).astype(loss_ref.dtype)


def _pick_tile_h(H, W, itemsize, budget):
    """Largest full-W tile: full H if it fits, else a multiple-of-8 divisor of H."""
    if H * W * itemsize <= budget:
        return H
    best = None
    for th in range(8, H, 8):
        if H % th == 0 and th * W * itemsize <= budget:
            best = th
    if best is not None:
        return best
    # TODO(synk): pathological H (no multiple-of-8 divisor yields an in-budget
    # tile) -> fall back to full-H blocks and rely on the raised VMEM limit.
    return H


def global_binary_loss(net_output, target, weight=1, tanh_use=False,
                       _force_tiled=False,
                       _tile_budget_bytes=_TILE_BUDGET_BYTES):
    """Pallas implementation of Global_Binary_loss.forward.

    `weight` and `tanh_use` are kept for signature parity; the PyTorch forward
    does not use them either.
    """
    b, c, H, W = net_output.shape
    assert c >= 2, "forward reads channel 1 of net_output"
    assert target.shape[0] == b and target.shape[-2:] == (H, W)

    # TODO(synk): torch.unique + print of net_output[0, 1] is a debug-only side
    # effect with no value semantics; not reproduced in the kernel.

    hw = H * W
    inv_hw = 1.0 / float(hw)
    pred_isz = jnp.dtype(net_output.dtype).itemsize
    tgt_isz = jnp.dtype(target.dtype).itemsize
    itemsize = max(pred_isz, tgt_isz)

    # True HBM traffic: one channel slab per input + tiny output.
    bytes_accessed = int(b * hw * (pred_isz + tgt_isz) + b * _LANES * 4)
    cost = pl.CostEstimate(flops=4 * b * hw, transcendentals=3 * b,
                           bytes_accessed=bytes_accessed)

    small = (b * hw * itemsize <= _tile_budget_bytes) and not _force_tiled
    if small:
        # --- Fast path: whole problem in one grid step ---------------------
        kernel = functools.partial(_fused_small_kernel, inv_hw=inv_hw,
                                   inv_b=1.0 / float(b))
        out = pl.pallas_call(
            kernel,
            out_shape=jax.ShapeDtypeStruct((1, _LANES), jnp.float32),
            grid_spec=pltpu.PrefetchScalarGridSpec(
                num_scalar_prefetch=0,
                grid=(1,),
                in_specs=[
                    pl.BlockSpec((b, None, H, W), lambda i: (0, 1, 0, 0)),
                    pl.BlockSpec((b, None, H, W), lambda i: (0, 0, 0, 0)),
                ],
                out_specs=pl.BlockSpec((1, _LANES), lambda i: (0, 0)),
            ),
            compiler_params=pltpu.CompilerParams(
                dimension_semantics=("arbitrary",),
                vmem_limit_bytes=_VMEM_LIMIT_BYTES,
            ),
            cost_estimate=cost,
        )(net_output, target)
        return out[0, 0]

    # --- Tiled path: grid = (batch, spatial tiles of full-W rows) -----------
    tile_h = _pick_tile_h(H, W, itemsize, _tile_budget_bytes)
    num_spatial = H // tile_h

    tile_bytes = tile_h * W * itemsize
    # 2 inputs x 2 pipeline buffers, plus headroom for output/scratch.
    vmem_limit = int(max(_VMEM_LIMIT_BYTES,
                         min(4 * tile_bytes + (4 << 20), 96 << 20)))

    kernel = functools.partial(_tiled_kernel, inv_hw=inv_hw)
    per_batch = pl.pallas_call(
        kernel,
        out_shape=jax.ShapeDtypeStruct((b, 1, _LANES), jnp.float32),
        grid_spec=pltpu.PrefetchScalarGridSpec(
            num_scalar_prefetch=0,
            grid=(b, num_spatial),
            in_specs=[
                pl.BlockSpec((None, None, tile_h, W), lambda i, j: (i, 1, j, 0)),
                pl.BlockSpec((None, None, tile_h, W), lambda i, j: (i, 0, j, 0)),
            ],
            out_specs=pl.BlockSpec((None, 1, _LANES), lambda i, j: (i, 0, 0)),
            scratch_shapes=[pltpu.VMEM((1, W), jnp.float32),
                            pltpu.VMEM((1, W), jnp.float32)],
        ),
        compiler_params=pltpu.CompilerParams(
            # batch axis "parallel" (v7x megacore sharding); spatial reduction
            # axis "arbitrary" (scratch accumulators carried across it).
            # TODO(synk): for b == 1 on v7x, a spatial "parallel" split with
            # partial-sum outputs would engage the second TensorCore.
            dimension_semantics=("parallel", "arbitrary"),
            vmem_limit_bytes=vmem_limit,
        ),
        cost_estimate=cost,
    )(net_output, target)

    # mean over batch (PyTorch BCE default reduction='mean')
    return jnp.mean(per_batch[:, 0, 0])


def _reference(net_output, target):
    # pure-JAX reference mirroring the PyTorch forward
    x = jnp.mean(net_output[:, 1, :, :].astype(jnp.float32), axis=(1, 2))
    g = jnp.mean(target[:, 0, :, :].astype(jnp.float32), axis=(1, 2))
    y = jax.nn.sigmoid(g)
    per = jnp.maximum(x, 0.0) - x * y + jnp.log1p(jnp.exp(-jnp.abs(x)))
    return jnp.mean(per)


if __name__ == "__main__":
    key = jax.random.PRNGKey(0)
    k1, k2 = jax.random.split(key)

    B, C, H, W = 2, 4, 16, 16
    net_output = jax.random.normal(k1, (B, C, H, W), dtype=jnp.float32)
    target = (jax.random.uniform(k2, (B, 1, H, W)) > 0.5).astype(jnp.float32)

    ref = jax.block_until_ready(_reference(net_output, target))

    # Fast path (single fused grid step).
    loss_fast = jax.block_until_ready(global_binary_loss(net_output, target))
    assert jnp.allclose(loss_fast, ref, atol=1e-5, rtol=1e-5), (loss_fast, ref)

    # Tiled path, one full-H spatial tile per batch.
    loss_tiled = jax.block_until_ready(
        global_binary_loss(net_output, target, _force_tiled=True))
    assert jnp.allclose(loss_tiled, ref, atol=1e-5, rtol=1e-5), (loss_tiled, ref)

    # Tiled path, multiple spatial tiles per batch (tiny budget -> tile_h=8).
    loss_multi = jax.block_until_ready(
        global_binary_loss(net_output, target, _force_tiled=True,
                           _tile_budget_bytes=512))
    assert jnp.allclose(loss_multi, ref, atol=1e-5, rtol=1e-5), (loss_multi, ref)

    print("KERNEL_OK")
</pallas_src>

<mosaic_0001>
module attributes {stable_mosaic.version = 11 : i64} {
  func.func @_fused_small_kernel(%arg0: i32, %arg1: memref<2x1x16x16xf32, #tpu.memory_space<vmem>>, %arg2: memref<2x1x16x16xf32, #tpu.memory_space<vmem>>, %arg3: memref<1x128xf32, #tpu.memory_space<vmem>>) attributes {dimension_semantics = [#tpu.dimension_semantics<arbitrary>], iteration_bounds = array<i64: 1>, scalar_prefetch = 0 : i64, scratch_operands = 0 : i64, tpu.core_type = #tpu.core_type<tc>, window_params = [{transform_indices = @transform_0, window_bounds = array<i64: 2, 1, 16, 16>}, {pipeline_mode = #tpu.pipeline_mode<synchronous>, transform_indices = @transform_1, window_bounds = array<i64: 2, 1, 16, 16>}, {pipeline_mode = #tpu.pipeline_mode<synchronous>, transform_indices = @transform_2, window_bounds = array<i64: 1, 128>}]} {
    %c0 = arith.constant 0 : index
    %c0_0 = arith.constant 0 : index
    %c0_1 = arith.constant 0 : index
    %c0_2 = arith.constant 0 : index
    %0 = vector.load %arg1[%c0, %c0_0, %c0_1, %c0_2] : memref<2x1x16x16xf32, #tpu.memory_space<vmem>>, vector<2x1x16x16xf32>
    %1 = vector.shape_cast %0 : vector<2x1x16x16xf32> to vector<2x16x16xf32>
    %c0_3 = arith.constant 0 : index
    %c0_4 = arith.constant 0 : index
    %c0_5 = arith.constant 0 : index
    %c0_6 = arith.constant 0 : index
    %2 = vector.load %arg2[%c0_3, %c0_4, %c0_5, %c0_6] : memref<2x1x16x16xf32, #tpu.memory_space<vmem>>, vector<2x1x16x16xf32>
    %3 = vector.shape_cast %2 : vector<2x1x16x16xf32> to vector<2x16x16xf32>
    %cst = arith.constant dense<0.000000e+00> : vector<2x16xf32>
    %4 = vector.multi_reduction <add>, %1, %cst [2] : vector<2x16x16xf32> to vector<2x16xf32>
    %cst_7 = arith.constant dense<0.000000e+00> : vector<2xf32>
    %5 = vector.multi_reduction <add>, %4, %cst_7 [1] : vector<2x16xf32> to vector<2xf32>
    %6 = vector.shape_cast %5 : vector<2xf32> to vector<2x1xf32>
    %cst_8 = arith.constant 3.906250e-03 : f32
    %7 = vector.broadcast %cst_8 : f32 to vector<2x1xf32>
    %8 = arith.mulf %6, %7 : vector<2x1xf32>
    %cst_9 = arith.constant dense<0.000000e+00> : vector<2x16xf32>
    %9 = vector.multi_reduction <add>, %3, %cst_9 [2] : vector<2x16x16xf32> to vector<2x16xf32>
    %cst_10 = arith.constant dense<0.000000e+00> : vector<2xf32>
    %10 = vector.multi_reduction <add>, %9, %cst_10 [1] : vector<2x16xf32> to vector<2xf32>
    %11 = vector.shape_cast %10 : vector<2xf32> to vector<2x1xf32>
    %cst_11 = arith.constant 3.906250e-03 : f32
    %12 = vector.broadcast %cst_11 : f32 to vector<2x1xf32>
    %13 = arith.mulf %11, %12 : vector<2x1xf32>
    %14 = arith.negf %13 : vector<2x1xf32>
    %15 = math.exp %14 : vector<2x1xf32>
    %cst_12 = arith.constant 1.000000e+00 : f32
    %16 = vector.broadcast %cst_12 : f32 to vector<2x1xf32>
    %17 = arith.addf %16, %15 : vector<2x1xf32>
    %18 = arith.divf %16, %17 : vector<2x1xf32>
    %cst_13 = arith.constant 0.000000e+00 : f32
    %19 = vector.broadcast %cst_13 : f32 to vector<2x1xf32>
    %20 = arith.maximumf %8, %19 : vector<2x1xf32>
    %21 = arith.mulf %8, %18 : vector<2x1xf32>
    %22 = arith.subf %20, %21 : vector<2x1xf32>
    %23 = math.absf %8 : vector<2x1xf32>
    %cst_14 = arith.constant 0.000000e+00 : f32
    %24 = vector.broadcast %cst_14 : f32 to vector<2x1xf32>
    %25 = arith.subf %24, %23 : vector<2x1xf32>
    %26 = math.exp %25 : vector<2x1xf32>
    %27 = math.log1p %26 : vector<2x1xf32>
    %28 = arith.addf %22, %27 : vector<2x1xf32>
    %cst_15 = arith.constant dense<0.000000e+00> : vector<1xf32>
    %29 = vector.multi_reduction <add>, %28, %cst_15 [0] : vector<2x1xf32> to vector<1xf32>
    %30 = vector.shape_cast %29 : vector<1xf32> to vector<1x1xf32>
    %cst_16 = arith.constant 5.000000e-01 : f32
    %31 = vector.broadcast %cst_16 : f32 to vector<1x1xf32>
    %32 = arith.mulf %30, %31 : vector<1x1xf32>
    %33 = vector.shape_cast %32 : vector<1x1xf32> to vector<1x1xf32>
    %34 = vector.broadcast %33 : vector<1x1xf32> to vector<1x128xf32>
    %c0_17 = arith.constant 0 : index
    %c0_18 = arith.constant 0 : index
    %35 = vector.load %arg3[%c0_17, %c0_18] : memref<1x128xf32, #tpu.memory_space<vmem>>, vector<1x128xf32>
    tpu.vector_store %arg3[%c0_17, %c0_18], %34 {strides = array<i32>} : memref<1x128xf32, #tpu.memory_space<vmem>>, vector<1x128xf32>,
    return
  }
  func.func @transform_0(%arg0: i32) -> (i32, i32, i32, i32) {
    %c0_i32 = arith.constant 0 : i32
    %c1_i32 = arith.constant 1 : i32
    %c0_i32_0 = arith.constant 0 : i32
    %c0_i32_1 = arith.constant 0 : i32
    %c0_i32_2 = arith.constant 0 : i32
    return %c0_i32, %c1_i32, %c0_i32_0, %c0_i32_1 : i32, i32, i32, i32
  }
  func.func @transform_1(%arg0: i32) -> (i32, i32, i32, i32) {
    %c0_i32 = arith.constant 0 : i32
    %c0_i32_0 = arith.constant 0 : i32
    %c0_i32_1 = arith.constant 0 : i32
    %c0_i32_2 = arith.constant 0 : i32
    %c0_i32_3 = arith.constant 0 : i32
    return %c0_i32, %c0_i32_0, %c0_i32_1, %c0_i32_2 : i32, i32, i32, i32
  }
  func.func @transform_2(%arg0: i32) -> (i32, i32) {
    %c0_i32 = arith.constant 0 : i32
    %c0_i32_0 = arith.constant 0 : i32
    %c0_i32_1 = arith.constant 0 : i32
    return %c0_i32, %c0_i32_0 : i32, i32
  }
}

</mosaic_0001>

<llo_original>
// kernel: tpu_custom_call.1
$region0: #{tpu_custom_call.1}
  #allocation0 [shape = 'u32[]', space=smem, size = 0x4, offset = 0x4, fixed_abs, tag = 'smem constant byte address 0x4 - core index']
  #allocation1 [shape = 'u32[144,128]{1,0:T(1,128)}', space=vmem, size = 0x12000, scoped, tag = 'internal scratch']
  #allocation8 [shape = 's32[]', space=sflag, size = 0x4, offset = 0, fixed_abs, tag = 'sflag constant byte address 0x0 - dummy sync flag']
  %s0 = inlined_call_operand.hbm [shape: f32[2,4,16,16], index: 0, kind: input, shape index: {}]
  %s1 = inlined_call_operand.hbm [shape: f32[2,1,16,16], index: 1, kind: input, shape index: {}]
  %s2 = inlined_call_operand.hbm [shape: f32[1,128], index: 2, kind: output, shape index: {}]
  %s3 = sld [smem:[#allocation0]]
  $region26: #{tpu_custom_call.1} parent=0
    _
  %s5 = ssub.s32 1, %s3
  %s6 = scalar_select 0, %s5, %s3
  $region1: #{tpu_custom_call.1} parent=0
    #allocation2 [shape = 'u8[16384]{0}', space=vmem, size = 0x4000, scoped, tag = 'input window, operand 0, single buffered']
    #allocation3 [shape = 's32[1]{0}', space=sflag, size = 0x4, scoped, tag = 'scoped memory for tpu_custom_call.1']
    #allocation4 [shape = 's32[1]{0}', space=sflag, size = 0x4, scoped, tag = 'scoped memory for tpu_custom_call.1']
    #allocation5 [shape = 'u8[16384]{0}', space=vmem, size = 0x4000, scoped, tag = 'input window, operand 1, single buffered']
    #allocation6 [shape = 's32[1]{0}', space=sflag, size = 0x4, scoped, tag = 'scoped memory for tpu_custom_call.1']
    #allocation7 [shape = 'u8[512]{0}', space=vmem, size = 0x400, scoped, tag = 'output window, operand 0, single buffered']
    %7 = vsyncpa [#allocation3], 0
    %8 = vsyncpa [#allocation6], 0
    %9 = vsyncpa [#allocation4], 0
    // Predicated region
    $region2: #{tpu_custom_call.1} parent=1 // pred_check
      _
    $region3: #{tpu_custom_call.1} parent=1 // pred_check_branch
      %11 = sbr.rel (0) target = $region5
    $region4: #{tpu_custom_call.1} parent=1 // pred_region
      #allocation9 [shape = 'u32[6]{0}', space=smem, size = 0x18, scoped, tag = 'DMA stride descriptor']
      %s13 = ssub.s32 512, 512
      %14 = vsyncadd [#allocation3], %s13
      %s15 = scalar_lea.hbm %s0, 256
      %s17 = sshll.u32 1, 14
      %s18 = sxor.u32 4294967295, %s17
      %s20 = sld [smem:[#allocation0]]
      %s21 = sadd.s32 2, %s20
      %s23 = sshll.u32 7, 26
      %s24 = sxor.u32 4294967295, %s23
      %s25 = sand.u32 0, %s24
      %s26 = sshll.u32 %s21, 26
      %s27 = sor.u32 %s25, %s26
      %s28 = sshll.u32 [#allocation2], 4
      %s29 = int_to_ptr.vmem [resolvable:$true] %s28
      %35 = sst [smem:[#allocation9]] 1024
      %s36 = scalar_lea.smem [#allocation9], 1
      %37 = sst [smem:[%s36]] 256
      %s38 = scalar_lea.smem [#allocation9], 2
      %39 = sst [smem:[%s38]] 2
      %s40 = scalar_lea.smem [#allocation9], 3
      %41 = sst [smem:[%s40]] 128
      %s42 = scalar_lea.smem [#allocation9], 4
      %43 = sst [smem:[%s42]] 128
      %s44 = scalar_lea.smem [#allocation9], 5
      %45 = sst [smem:[%s44]] 8
      %47 = dma.general %s15, 512, %s29, [#allocation3], [#allocation8], [#allocation9], %s27, 0
    $region5: #{tpu_custom_call.1} parent=1 // pred_fallthru
      _
    // Predicated region
    $region6: #{tpu_custom_call.1} parent=1 // pred_check
      _
    $region7: #{tpu_custom_call.1} parent=1 // pred_check_branch
      %49 = sbr.rel (0) target = $region9
    $region8: #{tpu_custom_call.1} parent=1 // pred_region
      %s51 = ssub.s32 512, 512
      %52 = vsyncadd [#allocation6], %s51
      %s53 = sshll.u32 [#allocation5], 4
      %s54 = int_to_ptr.vmem [resolvable:$true] %s53
      %59 = dma.hbm_to_vmem [thread:$0]  %s1, 512, %s54, [#allocation6], 128, 128, 8
    $region9: #{tpu_custom_call.1} parent=1 // pred_fallthru
      _
    // Predicated region
    $region10: #{tpu_custom_call.1} parent=1 // pred_check
      _
    $region11: #{tpu_custom_call.1} parent=1 // pred_check_branch
      %61 = sbr.rel (0) target = $region13
    $region12: #{tpu_custom_call.1} parent=1 // pred_region
      %62 = dma.done [#allocation3], 512
    $region13: #{tpu_custom_call.1} parent=1 // pred_fallthru
      _
    // Predicated region
    $region14: #{tpu_custom_call.1} parent=1 // pred_check
      _
    $region15: #{tpu_custom_call.1} parent=1 // pred_check_branch
      %64 = sbr.rel (0) target = $region17
    $region16: #{tpu_custom_call.1} parent=1 // pred_region
      %65 = dma.done [#allocation6], 512
    $region17: #{tpu_custom_call.1} parent=1 // pred_fallthru
      _
    %v66 = vld [vmem:[#allocation2] sm:$0xff]
    %v67 = vld [vmem:[#allocation2 + $0x8] sm:$0xff]
    %v68 = vld [vmem:[#allocation2 + $0x10] sm:$0xff]
    %v69 = vld [vmem:[#allocation2 + $0x18] sm:$0xff]
    %v70 = vld [vmem:[#allocation5] sm:$0xff]
    %v71 = vld [vmem:[#allocation5 + $0x8] sm:$0xff]
    %v72 = vld [vmem:[#allocation5 + $0x10] sm:$0xff]
    %v73 = vld [vmem:[#allocation5 + $0x18] sm:$0xff]
    %vm74 = vcmask 130048
    %v75 = vsel %vm74, %v66, 0.0
    %76 = vadd.xlane.f32.xlu0 %v75
    %v77 = vpop.xlane.xlu0 %76
    %v78 = vsel %vm74, %v67, 0.0
    %79 = vadd.xlane.f32.xlu0 %v78
    %v80 = vpop.xlane.xlu0 %79
    %v81 = vsel %vm74, %v68, 0.0
    %82 = vadd.xlane.f32.xlu0 %v81
    %v83 = vpop.xlane.xlu0 %82
    %v84 = vsel %vm74, %v69, 0.0
    %85 = vadd.xlane.f32.xlu0 %v84
    %v86 = vpop.xlane.xlu0 %85
    %v91 = vlaneseq
    %v92 = vand.u32 %v91, 127
    %v93 = vlaneseq
    %v94 = vshrl.u32 %v93, 7
    %v95 = vsub.s32 %v92, %v94
    %v96 = vrot.slane %v77, %v95
    %v97 = vadd.s32 %v92, 4294967288
    %v98 = vlaneseq
    %v99 = vshrl.u32 %v98, 7
    %v100 = vsub.s32 %v97, %v99
    %v101 = vrot.slane %v80, %v100
    %vm102 = vcmask 130112
    %v103 = vsel %vm102, %v101, %v96
    %v104 = vlaneseq
    %v105 = vshrl.u32 %v104, 7
    %v106 = vsub.s32 %v92, %v105
    %v107 = vrot.slane %v83, %v106
    %v108 = vlaneseq
    %v109 = vshrl.u32 %v108, 7
    %v110 = vsub.s32 %v97, %v109
    %v111 = vrot.slane %v86, %v110
    %v112 = vsel %vm102, %v111, %v107
    %vm113 = vcmask 1041409
    %v114 = vsel %vm113, %v112, %v103
    %vm116 = vcmask 123904
    %v117 = vsel %vm116, %v114, 0.0
    %118 = vadd.xlane.f32.xlu0 %v117
    %v119 = vpop.xlane.xlu0 %118
    %v120 = vmul.f32 %v119, 0.00390625
    %v121 = vsel %vm74, %v70, 0.0
    %122 = vadd.xlane.f32.xlu0 %v121
    %v123 = vpop.xlane.xlu0 %122
    %v124 = vsel %vm74, %v71, 0.0
    %125 = vadd.xlane.f32.xlu0 %v124
    %v126 = vpop.xlane.xlu0 %125
    %v127 = vsel %vm74, %v72, 0.0
    %128 = vadd.xlane.f32.xlu0 %v127
    %v129 = vpop.xlane.xlu0 %128
    %v130 = vsel %vm74, %v73, 0.0
    %131 = vadd.xlane.f32.xlu0 %v130
    %v132 = vpop.xlane.xlu0 %131
    %v137 = vlaneseq
    %v138 = vshrl.u32 %v137, 7
    %v139 = vsub.s32 %v92, %v138
    %v140 = vrot.slane %v123, %v139
    %v141 = vlaneseq
    %v142 = vshrl.u32 %v141, 7
    %v143 = vsub.s32 %v97, %v142
    %v144 = vrot.slane %v126, %v143
    %v145 = vsel %vm102, %v144, %v140
    %v146 = vlaneseq
    %v147 = vshrl.u32 %v146, 7
    %v148 = vsub.s32 %v92, %v147
    %v149 = vrot.slane %v129, %v148
    %v150 = vlaneseq
    %v151 = vshrl.u32 %v150, 7
    %v152 = vsub.s32 %v97, %v151
    %v153 = vrot.slane %v132, %v152
    %v154 = vsel %vm102, %v153, %v149
    %v155 = vsel %vm113, %v154, %v145
    %v157 = vsel %vm116, %v155, 0.0
    %158 = vadd.xlane.f32.xlu0 %v157
    %v159 = vpop.xlane.xlu0 %158
    %v160 = vmul.f32 %v159, 0.00390625
    %v161 = vxor.u32 %v160, 2147483648
    %v162 = vmul.f32 %v161, 1.442695
    %v163 = vpow.pop %v162
    %v164 = vadd.f32 %v163, 1.0
    %v165 = vrcp.pop %v164
    %v166 = vmul.f32 1.0, %v165
    %v167 = vmax.f32 %v120, 0.0
    %v168 = vmul.f32 %v120, %v166
    %v169 = vsub.f32 %v167, %v168
    %v170 = vand.u32 2147483647, %v120
    %v171 = vsub.f32 0.0, %v170
    %v172 = vmul.f32 %v171, 1.442695
    %v173 = vpow.pop %v172
    %v174 = vadd.f32 %v173, 1.0
    %v175 = vlog2.pop %v174
    %v176 = vmul.f32 %v175, 0.6931472
    %v177 = vmul.f32 -0.5, %v173
    %v178 = vadd.f32 %v177, 1.0
    %v179 = vmul.f32 %v178, %v173
    %v180 = vand.u32 2147483647, %v173
    %vm181 = vcmp.lt.f32.partialorder %v180, 0.0004427343
    %v182 = vsel %vm181, %v179, %v176
    %v183 = vadd.f32 %v169, %v182
    %vm184 = vcmask 1041408
    %v185 = vsel %vm184, %v183, 0.0
    %v186 = vrot.slane %v185, 4
    %v187 = vadd.f32 %v185, %v186
    %v188 = vrot.slane %v187, 2
    %v189 = vadd.f32 %v187, %v188
    %v190 = vrot.slane %v189, 1
    %v191 = vadd.f32 %v189, %v190
    %v192 = vmul.f32 %v191, 0.5
    %193 = vst [vmem:[#allocation7] sm:$0x1] %v192
    // Predicated region
    $region18: #{tpu_custom_call.1} parent=1 // pred_check
      _
    $region19: #{tpu_custom_call.1} parent=1 // pred_check_branch
      %195 = sbr.rel (0) target = $region21
    $region20: #{tpu_custom_call.1} parent=1 // pred_region
      %s197 = ssub.s32 16, 16
      %198 = vsyncadd [#allocation4], %s197
      %s200 = sshll.u32 [#allocation7], 4
      %s201 = int_to_ptr.vmem [resolvable:$true] %s200
      %203 = dma.vmem_to_hbm [thread:$0]  %s201, 16, %s2, [#allocation4]
    $region21: #{tpu_custom_call.1} parent=1 // pred_fallthru
      _
    // Predicated region
    $region22: #{tpu_custom_call.1} parent=1 // pred_check
      _
    $region23: #{tpu_custom_call.1} parent=1 // pred_check_branch
      %205 = sbr.rel (0) target = $region25
    $region24: #{tpu_custom_call.1} parent=1 // pred_region
      %206 = dma.done [#allocation4], 16
    $region25: #{tpu_custom_call.1} parent=1 // pred_fallthru
      _
    %207 = vsyncpa [#allocation3], 1
    %208 = vsyncpa [#allocation6], 1
    %209 = vsyncpa [#allocation4], 1

</llo_original>
